<compile_context>
chip_gen: v7x
topology: tpu7x:2x2x1
jax: 0.10.0
libtpu: 0.0.40
codegen_flags: <defaults>
</compile_context>

<pallas_src>
import functools

import jax
import jax.numpy as jnp
from jax.experimental import pallas as pl
from jax.experimental.pallas import tpu as pltpu


_LANE = 128               # lane width (last-dim alignment)
_DEFAULT_TK_MAX = 32768   # feature-tile width cap when the reduction must be tiled
                          # (v6e/v5e can go to 65536 with a larger vmem_limit_bytes)


def _round_up(x, m):
    return (x + m - 1) // m * m


def _plan(feature_dim, tk_max):
    """Return (tk, f_pad): feature tile width and (possibly padded) feature extent.

    Prefers (a) a single full-width step, then (b) a 128-multiple tile that divides
    feature_dim exactly (no padded HBM copy of x), then (c) a padded tail as a last
    resort.
    """
    if feature_dim <= tk_max:
        return feature_dim, feature_dim            # single grid step, no padding
    tk0 = (tk_max // _LANE) * _LANE
    for tk in range(tk0, 0, -_LANE):               # exact divisor of F if one exists
        if feature_dim % tk == 0:
            return tk, feature_dim
    return tk0, _round_up(feature_dim, tk0)        # fallback: pad the tail tile only


def fuse_classification_head_params(w1, b1, w2, b2, *,
                                    compute_dtype=jnp.bfloat16,
                                    tk_max=_DEFAULT_TK_MAX):
    """Fold class_embed2(class_embed(x)) into one affine map; cast weight for the MXU.

    w1: (num_classes, feature_dim), b1: (num_classes,)
    w2: (num_classes, hidden_dim),  b2: (num_classes,)   [hidden_dim == num_classes]

    Returns:
      w_fused: (num_classes, F_pad) compute_dtype  == W2 @ W1 (feature-padded only if
               no 128-multiple tile divides F)
      b_fused: (1, num_classes) float32            == W2 @ b1 + b2
    Call once at parameter-init time, not per forward call.  Keep compute_dtype=f32
    if this head feeds a training loss and bf16 logit error matters.
    """
    num_classes, feature_dim = w1.shape
    assert w2.shape == (num_classes, num_classes), \
        "forward() requires hidden_dim == num_classes"

    w_fused = jnp.dot(w2.astype(jnp.float32), w1.astype(jnp.float32),
                      preferred_element_type=jnp.float32)            # (C, F)
    b_fused = (w2.astype(jnp.float32) @ b1.astype(jnp.float32)
               + b2.astype(jnp.float32))                              # (C,)

    _, f_pad = _plan(feature_dim, tk_max)
    if f_pad != feature_dim:
        w_fused = jnp.pad(w_fused, ((0, 0), (0, f_pad - feature_dim)))

    return w_fused.astype(compute_dtype), b_fused.reshape(1, num_classes)


def _cls_head_kernel(x_ref, w_ref, b_ref, o_ref):
    """Grid axis 0 reduces over feature tiles.

    The (B, C) float32 output block is resident across the whole reduction (out_spec
    index is constant in k) and is used directly as the accumulator.  It is seeded
    with the broadcast bias at k == 0, so no finalize branch is needed.
    """
    k = pl.program_id(0)

    @pl.when(k == 0)
    def _init():
        o_ref[...] = jnp.broadcast_to(b_ref[...], o_ref.shape)

    x_blk = x_ref[...].astype(jnp.bfloat16)        # cast in VMEM, hidden under DMA
    # Contract on the lane axis: x (B, tk) . w (C, tk)^T -> (B, C), f32 accumulation.
    o_ref[...] += jax.lax.dot_general(
        x_blk, w_ref[...],
        dimension_numbers=(((1,), (1,)), ((), ())),
        preferred_element_type=jnp.float32)


@functools.partial(jax.jit, static_argnames=("num_classes", "tk_max"))
def classification_head_forward(x, w_fused, b_fused, *, num_classes,
                                tk_max=_DEFAULT_TK_MAX):
    """x: (B, ...) any shape with a leading batch dim. Returns (B, num_classes) f32."""
    batch = x.shape[0]
    x_flat = x.reshape(batch, -1)                  # same as torch .reshape(B, -1)
    feature_dim = x_flat.shape[1]

    tk, f_pad = _plan(feature_dim, tk_max)
    if w_fused.shape != (num_classes, f_pad):
        raise ValueError(
            f"w_fused shape {w_fused.shape} does not match (num_classes={num_classes}, "
            f"f_pad={f_pad}); re-run fuse_classification_head_params with the same "
            f"feature_dim / tk_max as this call.")

    if f_pad != feature_dim:
        # Fallback only (no 128-multiple tile divides F): pads the tail tile so the
        # kernel never reads past the real activations.
        x_flat = jnp.pad(x_flat, ((0, 0), (0, f_pad - feature_dim)))

    grid = (f_pad // tk,)
    out = pl.pallas_call(
        _cls_head_kernel,
        out_shape=jax.ShapeDtypeStruct((batch, num_classes), jnp.float32),
        grid_spec=pltpu.PrefetchScalarGridSpec(
            num_scalar_prefetch=0,
            grid=grid,
            in_specs=[
                pl.BlockSpec((batch, tk), lambda k: (0, k)),          # activations
                pl.BlockSpec((num_classes, tk), lambda k: (0, k)),    # fused weight
                pl.BlockSpec((1, num_classes), lambda k: (0, 0)),     # fused bias
            ],
            out_specs=pl.BlockSpec((batch, num_classes), lambda k: (0, 0)),
        ),
        compiler_params=pltpu.CompilerParams(
            dimension_semantics=("arbitrary",),      # feature reduction axis
            vmem_limit_bytes=32 * 1024 * 1024,       # explicit: v5e default is 16 MiB
        ),
    )(x_flat, w_fused, b_fused)

    return out


def _reference(x, w1, b1, w2, b2):
    x_flat = x.reshape(x.shape[0], -1)
    y = x_flat @ w1.T + b1
    return y @ w2.T + b2


if __name__ == "__main__":
    # Small, forward-consistent shapes: num_classes == hidden_dim == 8.
    B, Cc, H, W = 2, 4, 16, 16
    feature_dim = Cc * H * W                       # 1024
    num_classes = 8
    hidden_dim = 8                                 # must equal num_classes (see NOTE above)

    key = jax.random.PRNGKey(0)
    kx, kw1, kb1, kw2, kb2 = jax.random.split(key, 5)

    x = jax.random.normal(kx, (B, Cc, H, W), dtype=jnp.float32)

    # Deterministic nn.Linear-style init: U(-1/sqrt(fan_in), 1/sqrt(fan_in)).
    lim1 = 1.0 / (feature_dim ** 0.5)
    w1 = jax.random.uniform(kw1, (num_classes, feature_dim), jnp.float32, -lim1, lim1)
    b1 = jax.random.uniform(kb1, (num_classes,), jnp.float32, -lim1, lim1)
    lim2 = 1.0 / (hidden_dim ** 0.5)
    w2 = jax.random.uniform(kw2, (num_classes, hidden_dim), jnp.float32, -lim2, lim2)
    b2 = jax.random.uniform(kb2, (num_classes,), jnp.float32, -lim2, lim2)

    # One-time parameter prep: algebraic fusion of the two Linears + bf16 cast.
    w_fused, b_fused = fuse_classification_head_params(w1, b1, w2, b2)

    out = classification_head_forward(x, w_fused, b_fused, num_classes=num_classes)
    out = jax.block_until_ready(out)

    ref = _reference(x, w1, b1, w2, b2)
    assert out.shape == (B, num_classes)
    # bf16 matmul operands with f32 accumulation -> ~1e-3 level absolute error expected.
    assert jnp.allclose(out, ref, atol=2e-2, rtol=2e-2), "mismatch vs reference"

    print("KERNEL_OK")
</pallas_src>

<mosaic_0001>
module attributes {stable_mosaic.version = 11 : i64} {
  func.func @_cls_head_kernel(%arg0: i32, %arg1: memref<2x1024xf32, #tpu.memory_space<vmem>>, %arg2: memref<8x1024xbf16, #tpu.memory_space<vmem>>, %arg3: memref<1x8xf32, #tpu.memory_space<vmem>>, %arg4: memref<2x8xf32, #tpu.memory_space<vmem>>) attributes {dimension_semantics = [#tpu.dimension_semantics<arbitrary>], iteration_bounds = array<i64: 1>, scalar_prefetch = 0 : i64, scratch_operands = 0 : i64, tpu.core_type = #tpu.core_type<tc>, window_params = [{transform_indices = @transform_0, window_bounds = array<i64: 2, 1024>}, {transform_indices = @transform_1, window_bounds = array<i64: 8, 1024>}, {pipeline_mode = #tpu.pipeline_mode<synchronous>, transform_indices = @transform_2, window_bounds = array<i64: 1, 8>}, {pipeline_mode = #tpu.pipeline_mode<synchronous>, transform_indices = @transform_3, window_bounds = array<i64: 2, 8>}]} {
    %c0_i32 = arith.constant 0 : i32
    %0 = arith.cmpi eq, %arg0, %c0_i32 : i32
    %1 = arith.extui %0 : i1 to i32
    %c0_i32_0 = arith.constant 0 : i32
    %2 = arith.cmpi ne, %1, %c0_i32_0 : i32
    scf.if %2 {
      %c0_8 = arith.constant 0 : index
      %c0_9 = arith.constant 0 : index
      %10 = vector.load %arg3[%c0_8, %c0_9] : memref<1x8xf32, #tpu.memory_space<vmem>>, vector<1x8xf32>
      %11 = vector.shape_cast %10 : vector<1x8xf32> to vector<1x8xf32>
      %12 = vector.broadcast %11 : vector<1x8xf32> to vector<2x8xf32>
      %c0_10 = arith.constant 0 : index
      %c0_11 = arith.constant 0 : index
      %13 = vector.load %arg4[%c0_10, %c0_11] : memref<2x8xf32, #tpu.memory_space<vmem>>, vector<2x8xf32>
      tpu.vector_store %arg4[%c0_10, %c0_11], %12 {strides = array<i32>} : memref<2x8xf32, #tpu.memory_space<vmem>>, vector<2x8xf32>,
    } else {
    }
    %c0 = arith.constant 0 : index
    %c0_1 = arith.constant 0 : index
    %3 = vector.load %arg1[%c0, %c0_1] : memref<2x1024xf32, #tpu.memory_space<vmem>>, vector<2x1024xf32>
    %4 = arith.truncf %3 : vector<2x1024xf32> to vector<2x1024xbf16>
    %c0_2 = arith.constant 0 : index
    %c0_3 = arith.constant 0 : index
    %5 = vector.load %arg4[%c0_2, %c0_3] : memref<2x8xf32, #tpu.memory_space<vmem>>, vector<2x8xf32>
    %c0_4 = arith.constant 0 : index
    %c0_5 = arith.constant 0 : index
    %6 = vector.load %arg2[%c0_4, %c0_5] : memref<8x1024xbf16, #tpu.memory_space<vmem>>, vector<8x1024xbf16>
    %cst = arith.constant dense<0.000000e+00> : vector<2x8xf32>
    %7 = tpu.matmul %4, %6, %cst {dimension_numbers = #tpu.dot_dimension_numbers<[1], [1], [0], [0], [0, 0, 1, 0], [], []>} : vector<2x1024xbf16>, vector<8x1024xbf16>, vector<2x8xf32> -> vector<2x8xf32>
    %8 = arith.addf %5, %7 : vector<2x8xf32>
    %c0_6 = arith.constant 0 : index
    %c0_7 = arith.constant 0 : index
    %9 = vector.load %arg4[%c0_6, %c0_7] : memref<2x8xf32, #tpu.memory_space<vmem>>, vector<2x8xf32>
    tpu.vector_store %arg4[%c0_6, %c0_7], %8 {strides = array<i32>} : memref<2x8xf32, #tpu.memory_space<vmem>>, vector<2x8xf32>,
    return
  }
  func.func @transform_0(%arg0: i32) -> (i32, i32) {
    %c0_i32 = arith.constant 0 : i32
    %c0_i32_0 = arith.constant 0 : i32
    return %c0_i32, %arg0 : i32, i32
  }
  func.func @transform_1(%arg0: i32) -> (i32, i32) {
    %c0_i32 = arith.constant 0 : i32
    %c0_i32_0 = arith.constant 0 : i32
    return %c0_i32, %arg0 : i32, i32
  }
  func.func @transform_2(%arg0: i32) -> (i32, i32) {
    %c0_i32 = arith.constant 0 : i32
    %c0_i32_0 = arith.constant 0 : i32
    %c0_i32_1 = arith.constant 0 : i32
    return %c0_i32, %c0_i32_0 : i32, i32
  }
  func.func @transform_3(%arg0: i32) -> (i32, i32) {
    %c0_i32 = arith.constant 0 : i32
    %c0_i32_0 = arith.constant 0 : i32
    %c0_i32_1 = arith.constant 0 : i32
    return %c0_i32, %c0_i32_0 : i32, i32
  }
}

</mosaic_0001>

<llo_original>
// kernel: classification_head_forward.1
$region0: #{classification_head_forward.1}
  #allocation0 [shape = 'u32[]', space=smem, size = 0x4, offset = 0x4, fixed_abs, tag = 'smem constant byte address 0x4 - core index']
  #allocation1 [shape = 'u32[144,128]{1,0:T(1,128)}', space=vmem, size = 0x12000, scoped, tag = 'internal scratch']
  %s0 = inlined_call_operand.vmem [shape: f32[2,1024], index: 0, kind: input, shape index: {}]
  %s1 = inlined_call_operand.vmem [shape: bf16[8,1024], index: 1, kind: input, shape index: {}]
  %s2 = inlined_call_operand.vmem [shape: f32[1,8], index: 2, kind: input, shape index: {}]
  %s3 = inlined_call_operand.hbm [shape: f32[2,8], index: 3, kind: output, shape index: {}]
  %s4 = sld [smem:[#allocation0]]
  $region26: #{classification_head_forward.1} parent=0
    _
  %s6 = ssub.s32 1, %s4
  %s7 = scalar_select 0, %s6, %s4
  $region1: #{classification_head_forward.1} parent=0
    #allocation2 [shape = 'u8[1024]{0}', space=vmem, size = 0x400, scoped, tag = 'output window, operand 0, single buffered']
    #allocation3 [shape = 's32[1]{0}', space=sflag, size = 0x4, scoped, tag = 'scoped memory for classification_head_forward.1']
    %8 = vsyncpa [#allocation3], 0
    // Predicated region
    $region2: #{classification_head_forward.1} parent=1 // pred_check
      _
    $region3: #{classification_head_forward.1} parent=1 // pred_check_branch
      %10 = sbr.rel (0) target = $region5
    $region4: #{classification_head_forward.1} parent=1 // pred_region
      _
    $region5: #{classification_head_forward.1} parent=1 // pred_fallthru
      _
    // Predicated region
    $region6: #{classification_head_forward.1} parent=1 // pred_check
      _
    $region7: #{classification_head_forward.1} parent=1 // pred_check_branch
      %12 = sbr.rel (0) target = $region9
    $region8: #{classification_head_forward.1} parent=1 // pred_region
      _
    $region9: #{classification_head_forward.1} parent=1 // pred_fallthru
      _
    // Predicated region
    $region10: #{classification_head_forward.1} parent=1 // pred_check
      _
    $region11: #{classification_head_forward.1} parent=1 // pred_check_branch
      %14 = sbr.rel (0) target = $region13
    $region12: #{classification_head_forward.1} parent=1 // pred_region
      _
    $region13: #{classification_head_forward.1} parent=1 // pred_fallthru
      _
    %p16 = scmp.eq.s32.totalorder 0, 0
    // Predicated region
    $region14: #{classification_head_forward.1} parent=1 // pred_check
      %p17 = pneg %p16
    $region15: #{classification_head_forward.1} parent=1 // pred_check_branch
      %19 = sbr.rel (%p17) target = $region17
    $region16: #{classification_head_forward.1} parent=1 // pred_region
      %v20 = vld [vmem:[%s2] sm:$0x1]
      %v22 = vlaneseq
      %v23 = vshrl.u32 %v22, 7
      %v24 = vsub.s32 0, %v23
      %v25 = vrot.slane %v20, %v24
      %vm27 = vcmask 58368
      %28 = vst.msk [vmem:[#allocation2] sm:$0x3] %vm27, %v25
    $region17: #{classification_head_forward.1} parent=1 // pred_fallthru
      _
    %v29 = vld [vmem:[%s0] sm:$0xff]
    %v30 = vld [vmem:[%s0 + $0x8] sm:$0xff]
    %v33 = vcombine.high %v29, %v29
    %v35 = vunpack.c.l.s4 1983009808
    %v36 = vunpack.c.0.s8 %v35
    %v37 = vlaneseq
    %v38 = vshrl.u32 %v37, 7
    %v39 = vsub.s32 %v36, %v38
    %v40 = vrot.slane %v29, %v39
    %v42 = vunpack.c.l.s4 1983009808
    %v43 = vunpack.c.0.s8 %v42
    %v44 = vlaneseq
    %v45 = vshrl.u32 %v44, 7
    %v46 = vsub.s32 %v43, %v45
    %v47 = vrot.slane %v33, %v46
    %v48 = vcombine.high %v40, %v40
    %v49 = vcombine.high %v47, %v47
    %v50 = vcombine.high %v30, %v30
    %v52 = vunpack.c.l.s4 1983009808
    %v53 = vunpack.c.0.s8 %v52
    %v54 = vlaneseq
    %v55 = vshrl.u32 %v54, 7
    %v56 = vsub.s32 %v53, %v55
    %v57 = vrot.slane %v30, %v56
    %v59 = vunpack.c.l.s4 1983009808
    %v60 = vunpack.c.0.s8 %v59
    %v61 = vlaneseq
    %v62 = vshrl.u32 %v61, 7
    %v63 = vsub.s32 %v60, %v62
    %v64 = vrot.slane %v50, %v63
    %v65 = vcombine.high %v57, %v57
    %v66 = vcombine.high %v64, %v64
    %v75 = vpack.c.bf16 %v40, %v40
    %v76 = vpack.c.bf16 %v48, %v48
    %v77 = vpack.c.bf16 %v47, %v47
    %v78 = vpack.c.bf16 %v49, %v49
    %v79 = vpack.c.bf16 %v57, %v57
    %v80 = vpack.c.bf16 %v65, %v65
    %v81 = vpack.c.bf16 %v64, %v64
    %v82 = vpack.c.bf16 %v66, %v66
    %v83 = vld [vmem:[#allocation2] sm:$0x3]
    %v84 = vld [vmem:[%s1] sm:$0xff]
    %v85 = vld [vmem:[%s1 + $0x8] sm:$0xff]
    %v86 = vld [vmem:[%s1 + $0x10] sm:$0xff]
    %v87 = vld [vmem:[%s1 + $0x18] sm:$0xff]
    %v92 = vunpack.c.l.b16 %v84
    %v93 = vunpack.c.h.b16 %v84
    %v94 = vunpack.c.l.b16 %v85
    %v95 = vunpack.c.h.b16 %v85
    %v96 = vunpack.c.l.b16 %v86
    %v97 = vunpack.c.h.b16 %v86
    %v98 = vunpack.c.l.b16 %v87
    %v99 = vunpack.c.h.b16 %v87
    %v100 = vpack.c.b16 %v92, %v92
    %v101 = vpack.c.b16 %v93, %v93
    %v102 = vpack.c.b16 %v94, %v94
    %v103 = vpack.c.b16 %v95, %v95
    %v104 = vpack.c.b16 %v96, %v96
    %v105 = vpack.c.b16 %v97, %v97
    %v106 = vpack.c.b16 %v98, %v98
    %v107 = vpack.c.b16 %v99, %v99
    %116 = vmatprep.subr.bf16.mxu0 %v101
    %117 = vmatpush1.bf16.xpose.msra.mxu0 %v100
    %118 = vmatprep.subr.bf16.mxu0 0
    %119 = vmatpush1.bf16.xpose.msra.mxu0 0
    %120 = vmatprep.subr.bf16.mxu0 0
    %121 = vmatpush1.bf16.xpose.msra.mxu0 0
    %122 = vmatprep.subr.bf16.mxu0 0
    %123 = vmatpush1.bf16.xpose.msra.mxu0 0
    %124 = vmatprep.subr.bf16.mxu0 0
    %125 = vmatpush1.bf16.xpose.msra.mxu0 0
    %126 = vmatprep.subr.bf16.mxu0 0
    %127 = vmatpush1.bf16.xpose.msra.mxu0 0
    %128 = vmatprep.subr.bf16.mxu0 0
    %129 = vmatpush1.bf16.xpose.msra.mxu0 0
    %130 = vmatprep.subr.bf16.mxu0 0
    %131 = vmatpush1.bf16.xpose.msra.mxu0 0
    %132 = vmatprep.subr.bf16.mxu0 0
    %133 = vmatpush1.bf16.xpose.msra.mxu0 0
    %134 = vmatprep.subr.bf16.mxu0 0
    %135 = vmatpush1.bf16.xpose.msra.mxu0 0
    %136 = vmatprep.subr.bf16.mxu0 0
    %137 = vmatpush1.bf16.xpose.msra.mxu0 0
    %138 = vmatprep.subr.bf16.mxu0 0
    %139 = vmatpush1.bf16.xpose.msra.mxu0 0
    %140 = vmatprep.subr.bf16.mxu0 0
    %141 = vmatpush1.bf16.xpose.msra.mxu0 0
    %142 = vmatprep.subr.bf16.mxu0 0
    %143 = vmatpush1.bf16.xpose.msra.mxu0 0
    %144 = vmatprep.subr.bf16.mxu0 0
    %145 = vmatpush1.bf16.xpose.msra.mxu0 0
    %146 = vmatprep.subr.bf16.mxu0 0
    %147 = vmatpush1.bf16.xpose.msra.mxu0 0
    %148 = vmatprep.mubr.bf16.mxu0 %v76
    %149 = vmatmul.mubr.bf16.gmra.mrb[0].mxu0 %v75
    %v150 = vpop.f32.mrb[0].mxu0
    %v151 = vadd.f32 0.0, %v150
    %v152 = vpop.f32.mrb[0].mxu0
    %v153 = vpop.f32.mrb[0].mxu0
    %v154 = vpop.f32.mrb[0].mxu0
    %155 = vdwg.mxu0
    %156 = vmatprep.subr.bf16.mxu0 %v103
    %157 = vmatpush1.bf16.xpose.msra.mxu0 %v102
    %158 = vmatprep.subr.bf16.mxu0 0
    %159 = vmatpush1.bf16.xpose.msra.mxu0 0
    %160 = vmatprep.subr.bf16.mxu0 0
    %161 = vmatpush1.bf16.xpose.msra.mxu0 0
    %162 = vmatprep.subr.bf16.mxu0 0
    %163 = vmatpush1.bf16.xpose.msra.mxu0 0
    %164 = vmatprep.subr.bf16.mxu0 0
    %165 = vmatpush1.bf16.xpose.msra.mxu0 0
    %166 = vmatprep.subr.bf16.mxu0 0
    %167 = vmatpush1.bf16.xpose.msra.mxu0 0
    %168 = vmatprep.subr.bf16.mxu0 0
    %169 = vmatpush1.bf16.xpose.msra.mxu0 0
    %170 = vmatprep.subr.bf16.mxu0 0
    %171 = vmatpush1.bf16.xpose.msra.mxu0 0
    %172 = vmatprep.subr.bf16.mxu0 0
    %173 = vmatpush1.bf16.xpose.msra.mxu0 0
    %174 = vmatprep.subr.bf16.mxu0 0
    %175 = vmatpush1.bf16.xpose.msra.mxu0 0
    %176 = vmatprep.subr.bf16.mxu0 0
    %177 = vmatpush1.bf16.xpose.msra.mxu0 0
    %178 = vmatprep.subr.bf16.mxu0 0
    %179 = vmatpush1.bf16.xpose.msra.mxu0 0
    %180 = vmatprep.subr.bf16.mxu0 0
    %181 = vmatpush1.bf16.xpose.msra.mxu0 0
    %182 = vmatprep.subr.bf16.mxu0 0
    %183 = vmatpush1.bf16.xpose.msra.mxu0 0
    %184 = vmatprep.subr.bf16.mxu0 0
    %185 = vmatpush1.bf16.xpose.msra.mxu0 0
    %186 = vmatprep.subr.bf16.mxu0 0
    %187 = vmatpush1.bf16.xpose.msra.mxu0 0
    %188 = vmatprep.mubr.bf16.mxu0 %v78
    %189 = vmatmul.mubr.bf16.gmra.mrb[0].mxu0 %v77
    %v190 = vpop.f32.mrb[0].mxu0
    %v191 = vadd.f32 %v151, %v190
    %v192 = vpop.f32.mrb[0].mxu0
    %v193 = vpop.f32.mrb[0].mxu0
    %v194 = vpop.f32.mrb[0].mxu0
    %195 = vdwg.mxu0
    %196 = vmatprep.subr.bf16.mxu0 %v105
    %197 = vmatpush1.bf16.xpose.msra.mxu0 %v104
    %198 = vmatprep.subr.bf16.mxu0 0
    %199 = vmatpush1.bf16.xpose.msra.mxu0 0
    %200 = vmatprep.subr.bf16.mxu0 0
    %201 = vmatpush1.bf16.xpose.msra.mxu0 0
    %202 = vmatprep.subr.bf16.mxu0 0
    %203 = vmatpush1.bf16.xpose.msra.mxu0 0
    %204 = vmatprep.subr.bf16.mxu0 0
    %205 = vmatpush1.bf16.xpose.msra.mxu0 0
    %206 = vmatprep.subr.bf16.mxu0 0
    %207 = vmatpush1.bf16.xpose.msra.mxu0 0
    %208 = vmatprep.subr.bf16.mxu0 0
    %209 = vmatpush1.bf16.xpose.msra.mxu0 0
    %210 = vmatprep.subr.bf16.mxu0 0
    %211 = vmatpush1.bf16.xpose.msra.mxu0 0
    %212 = vmatprep.subr.bf16.mxu0 0
    %213 = vmatpush1.bf16.xpose.msra.mxu0 0
    %214 = vmatprep.subr.bf16.mxu0 0
    %215 = vmatpush1.bf16.xpose.msra.mxu0 0
    %216 = vmatprep.subr.bf16.mxu0 0
    %217 = vmatpush1.bf16.xpose.msra.mxu0 0
    %218 = vmatprep.subr.bf16.mxu0 0
    %219 = vmatpush1.bf16.xpose.msra.mxu0 0
    %220 = vmatprep.subr.bf16.mxu0 0
    %221 = vmatpush1.bf16.xpose.msra.mxu0 0
    %222 = vmatprep.subr.bf16.mxu0 0
    %223 = vmatpush1.bf16.xpose.msra.mxu0 0
    %224 = vmatprep.subr.bf16.mxu0 0
    %225 = vmatpush1.bf16.xpose.msra.mxu0 0
    %226 = vmatprep.subr.bf16.mxu0 0
    %227 = vmatpush1.bf16.xpose.msra.mxu0 0
    %228 = vmatprep.mubr.bf16.mxu0 %v80
    %229 = vmatmul.mubr.bf16.gmra.mrb[0].mxu0 %v79
    %v230 = vpop.f32.mrb[0].mxu0
    %v231 = vadd.f32 %v191, %v230
    %v232 = vpop.f32.mrb[0].mxu0
    %v233 = vpop.f32.mrb[0].mxu0
    %v234 = vpop.f32.mrb[0].mxu0
    %235 = vdwg.mxu0
    %236 = vmatprep.subr.bf16.mxu0 %v107
    %237 = vmatpush1.bf16.xpose.msra.mxu0 %v106
    %238 = vmatprep.subr.bf16.mxu0 0
    %239 = vmatpush1.bf16.xpose.msra.mxu0 0
    %240 = vmatprep.subr.bf16.mxu0 0
    %241 = vmatpush1.bf16.xpose.msra.mxu0 0
    %242 = vmatprep.subr.bf16.mxu0 0
    %243 = vmatpush1.bf16.xpose.msra.mxu0 0
    %244 = vmatprep.subr.bf16.mxu0 0
    %245 = vmatpush1.bf16.xpose.msra.mxu0 0
    %246 = vmatprep.subr.bf16.mxu0 0
    %247 = vmatpush1.bf16.xpose.msra.mxu0 0
    %248 = vmatprep.subr.bf16.mxu0 0
    %249 = vmatpush1.bf16.xpose.msra.mxu0 0
    %250 = vmatprep.subr.bf16.mxu0 0
    %251 = vmatpush1.bf16.xpose.msra.mxu0 0
    %252 = vmatprep.subr.bf16.mxu0 0
    %253 = vmatpush1.bf16.xpose.msra.mxu0 0
    %254 = vmatprep.subr.bf16.mxu0 0
    %255 = vmatpush1.bf16.xpose.msra.mxu0 0
    %256 = vmatprep.subr.bf16.mxu0 0
    %257 = vmatpush1.bf16.xpose.msra.mxu0 0
    %258 = vmatprep.subr.bf16.mxu0 0
    %259 = vmatpush1.bf16.xpose.msra.mxu0 0
    %260 = vmatprep.subr.bf16.mxu0 0
    %261 = vmatpush1.bf16.xpose.msra.mxu0 0
    %262 = vmatprep.subr.bf16.mxu0 0
    %263 = vmatpush1.bf16.xpose.msra.mxu0 0
    %264 = vmatprep.subr.bf16.mxu0 0
    %265 = vmatpush1.bf16.xpose.msra.mxu0 0
    %266 = vmatprep.subr.bf16.mxu0 0
    %267 = vmatpush1.bf16.xpose.msra.mxu0 0
    %268 = vmatprep.mubr.bf16.mxu0 %v82
    %269 = vmatmul.mubr.bf16.gmra.mrb[0].mxu0 %v81
    %v270 = vpop.f32.mrb[0].mxu0
    %v271 = vadd.f32 %v231, %v270
    %v272 = vpop.f32.mrb[0].mxu0
    %v273 = vpop.f32.mrb[0].mxu0
    %v274 = vpop.f32.mrb[0].mxu0
    %275 = vdwg.mxu0
    %v276 = vadd.f32 %v83, %v271
    %vm277 = vcmask 58368
    %278 = vst.msk [vmem:[#allocation2] sm:$0x3] %vm277, %v276
    // Predicated region
    $region18: #{classification_head_forward.1} parent=1 // pred_check
      _
    $region19: #{classification_head_forward.1} parent=1 // pred_check_branch
      %280 = sbr.rel (0) target = $region21
    $region20: #{classification_head_forward.1} parent=1 // pred_region
      %s282 = ssub.s32 32, 32
      %283 = vsyncadd [#allocation3], %s282
      %s285 = sshll.u32 [#allocation2], 4
      %s286 = int_to_ptr.vmem [resolvable:$true] %s285
      %288 = dma.vmem_to_hbm [thread:$0]  %s286, 32, %s3, [#allocation3]
    $region21: #{classification_head_forward.1} parent=1 // pred_fallthru
      _
    // Predicated region
    $region22: #{classification_head_forward.1} parent=1 // pred_check
      _
    $region23: #{classification_head_forward.1} parent=1 // pred_check_branch
      %290 = sbr.rel (0) target = $region25
    $region24: #{classification_head_forward.1} parent=1 // pred_region
      %291 = dma.done [#allocation3], 32
    $region25: #{classification_head_forward.1} parent=1 // pred_fallthru
      _
    %292 = vsyncpa [#allocation3], 1

</llo_original>
